<compile_context>
chip_gen: v7x
topology: tpu7x:2x2x1
jax: 0.10.0
libtpu: 0.0.40
codegen_flags: <defaults>
</compile_context>

<pallas_src>
import functools

import jax
import jax.numpy as jnp
from jax.experimental import pallas as pl
from jax.experimental.pallas import tpu as pltpu


def _round_up(x, m):
    return (x + m - 1) // m * m


_TILE_CANDIDATES = (2048, 1024, 512, 256, 128, 64, 32, 16)


def _tpu_vmem_capacity_bytes():
    """Physical VMEM per core; conservative (v7x, 64 MiB) if the query fails."""
    try:
        info = pltpu.get_tpu_info()
        for attr in ("vmem_capacity_bytes", "vmem_size_bytes", "vmem_bytes"):
            val = getattr(info, attr, None)
            if val:
                return int(val)
    except Exception:
        pass
    return 64 * 1024 * 1024


def _vmem_budgets():
    cap = _tpu_vmem_capacity_bytes()
    tile_budget = int(cap * 0.60)   # bytes we allow the blocks to occupy
    vmem_limit = int(cap * 0.80)    # scoped-VMEM request (< physical)
    return tile_budget, vmem_limit


def _pick_tile_b(B, D, c_pad, o_pad, has_mixer, x_bytes, w_bytes_elt, budget):
    """Largest batch tile under the VMEM budget; >= 2 grid steps when free."""
    b_rounded = max(_round_up(B, 16), 16)
    # Grid-invariant blocks: assume single-buffered (bf16 weights, f32 bias).
    weight_bytes = D * o_pad * w_bytes_elt + o_pad * 4
    if has_mixer:
        weight_bytes += c_pad * o_pad * w_bytes_elt
    tile = 16
    for tb in _TILE_CANDIDATES:
        act_bytes = 2 * tb * (D * x_bytes                       # x (2 buffers)
                              + (c_pad * 2 if has_mixer else 0)  # bf16 mask
                              + o_pad * x_bytes)                 # output
        if weight_bytes + act_bytes <= budget:
            tile = tb
            break
    tile = min(tile, b_rounded)
    # Keep >= 2 grid steps (v7x has 2 TensorCores) when it adds no padding.
    if tile == b_rounded and tile >= 64 and tile % 32 == 0:
        tile //= 2
    return tile


def _const_spec(block_shape, single_buffer):
    """BlockSpec for a grid-invariant (weight/bias) block."""
    index_map = lambda i: (0,) * len(block_shape)
    if single_buffer:
        # Grid-invariant blocks don't need double buffering.
        return pl.BlockSpec(block_shape, index_map, pipeline_mode=pl.Buffered(1))
    return pl.BlockSpec(block_shape, index_map)


def _run(kernel, out_shape, grid, data_specs, const_shapes, out_spec,
         compiler_params, args):
    """pallas_call with single-buffered weight blocks; retry default-buffered
    if this jax version rejects the pipeline_mode hint."""
    last_err = None
    for single_buffer in (True, False):
        try:
            in_specs = list(data_specs) + [
                _const_spec(s, single_buffer) for s in const_shapes]
            return pl.pallas_call(
                kernel,
                out_shape=out_shape,
                grid_spec=pltpu.PrefetchScalarGridSpec(
                    num_scalar_prefetch=0,
                    grid=grid,
                    in_specs=in_specs,
                    out_specs=out_spec),
                compiler_params=compiler_params,
            )(*args)
        except Exception as e:   # noqa: BLE001 - retry once without the hint
            last_err = e
            if not single_buffer:
                raise
    raise last_err  # unreachable


# ---------------------------------------------------------------------------
# Kernels
# ---------------------------------------------------------------------------

def _mixture_kernel(x_ref, m_ref, wt_ref, wd_ref, b_ref, o_ref, *, c_pad):
    # x_ref : [TB, D]       activation tile
    # m_ref : [TB, c_pad]   which-mask tile (bf16 0/1, zero-padded past C)
    # wt_ref: [D, O_pad]    W_target (compute dtype, e.g. bf16)
    # wd_ref: [c_pad, O_pad] W_mixer - W_target[:C] (compute dtype)
    # b_ref : [1, O_pad]    b_target + b_mixer (f32)
    cd = wt_ref.dtype
    x = x_ref[...]
    # Mask multiply in f32 on the VPU (v5e has no bf16 VALU); cast at the dot.
    xm = x[:, :c_pad].astype(jnp.float32) * m_ref[...].astype(jnp.float32)
    out = jnp.dot(x.astype(cd), wt_ref[...], preferred_element_type=jnp.float32)
    out = out + jnp.dot(xm.astype(cd), wd_ref[...],
                        preferred_element_type=jnp.float32)
    out = out + b_ref[...]
    o_ref[...] = out.astype(o_ref.dtype)


def _target_only_kernel(x_ref, wt_ref, b_ref, o_ref):
    # Specialized `which is None` path: out = x @ Wt + bt (single matmul).
    out = jnp.dot(x_ref[...].astype(wt_ref.dtype), wt_ref[...],
                  preferred_element_type=jnp.float32)
    out = out + b_ref[...]
    o_ref[...] = out.astype(o_ref.dtype)


# ---------------------------------------------------------------------------
# Cold path: per-model weight preprocessing (cache the result!)
# ---------------------------------------------------------------------------

def prepare_concept_mixture_params(w_target, b_target, w_mixer, b_mixer,
                                   concept_dim, *, compute_dtype=jnp.bfloat16):
    """Static preprocessing hoisted out of the per-call hot path.

    w_target: [D, O] (pre-transposed: in x out), b_target: [O],
    w_mixer : [C, O], b_mixer: [O].
    """
    D, O = w_target.shape
    C = concept_dim
    # Lane-dense output only when O already spans >= one full lane tile;
    # for small O, padding to 128 + stripping costs more HBM traffic than
    # masked stores.
    o_pad = O if (O < 128 or O % 128 == 0) else _round_up(O, 128)
    c_pad = min(_round_up(C, 128), D)    # contraction dim of the delta matmul

    wt32 = w_target.astype(jnp.float32)
    wm32 = w_mixer.astype(jnp.float32)
    wt = jnp.pad(wt32, ((0, 0), (0, o_pad - O))).astype(compute_dtype)
    w_delta = jnp.pad(wm32 - wt32[:C],
                      ((0, c_pad - C), (0, o_pad - O))).astype(compute_dtype)
    bt = jnp.pad(b_target.astype(jnp.float32), (0, o_pad - O)).reshape(1, o_pad)
    b_total = jnp.pad((b_target + b_mixer).astype(jnp.float32),
                      (0, o_pad - O)).reshape(1, o_pad)
    return dict(wt=wt, w_delta=w_delta, bt=bt, b_total=b_total,
                concept_dim=C, c_pad=c_pad, D=D, O=O, o_pad=o_pad)


# ---------------------------------------------------------------------------
# Hot path
# ---------------------------------------------------------------------------

def concept_mixture_apply(params, x, which=None, *, tile_b=None,
                          keep_padded_output=False):
    """x: [B, D]; which: [B, concept_dim] bool or None."""
    B, D = x.shape
    assert D == params["D"], (D, params["D"])
    C = params["concept_dim"]
    c_pad, O, o_pad = params["c_pad"], params["O"], params["o_pad"]
    has_mixer = which is not None

    tile_budget, vmem_limit = _vmem_budgets()
    if tile_b is None:
        tile_b = _pick_tile_b(B, D, c_pad, o_pad, has_mixer,
                              jnp.dtype(x.dtype).itemsize,
                              jnp.dtype(params["wt"].dtype).itemsize,
                              tile_budget)
    B_pad = _round_up(max(B, tile_b), tile_b)

    # Pad only when actually required (avoids an extra HBM pass over x/out).
    x_in = x if B_pad == B else jnp.pad(x, ((0, B_pad - B), (0, 0)))
    grid = (B_pad // tile_b,)
    compiler_params = pltpu.CompilerParams(
        dimension_semantics=("parallel",),
        vmem_limit_bytes=vmem_limit)
    out_spec = pl.BlockSpec((tile_b, o_pad), lambda i: (i, 0))
    out_shape = jax.ShapeDtypeStruct((B_pad, o_pad), x.dtype)

    # TODO(synk): for very large D x O (weights that don't fit VMEM), add a K
    # (and N) grid axis with an f32 accumulator scratch + pl.when init/finalize
    # instead of requiring full [D, O_pad] weights resident.
    if not has_mixer:
        out = _run(
            _target_only_kernel, out_shape, grid,
            data_specs=[pl.BlockSpec((tile_b, D), lambda i: (i, 0))],
            const_shapes=[(D, o_pad), (1, o_pad)],
            out_spec=out_spec, compiler_params=compiler_params,
            args=(x_in, params["wt"], params["bt"]))
    else:
        # bf16 mask: half the HBM bytes of f32; exact 0/1 values.
        mask = which.astype(jnp.bfloat16)
        if B_pad != B or c_pad != C:
            mask = jnp.pad(mask, ((0, B_pad - B), (0, c_pad - C)))
        kernel = functools.partial(_mixture_kernel, c_pad=c_pad)
        out = _run(
            kernel, out_shape, grid,
            data_specs=[pl.BlockSpec((tile_b, D), lambda i: (i, 0)),      # x
                        pl.BlockSpec((tile_b, c_pad), lambda i: (i, 0))],  # mask
            const_shapes=[(D, o_pad), (c_pad, o_pad), (1, o_pad)],
            out_spec=out_spec, compiler_params=compiler_params,
            args=(x_in, mask, params["wt"], params["w_delta"],
                  params["b_total"]))

    if keep_padded_output or (B_pad == B and o_pad == O):
        return out
    return out[:B, :O]


def concept_mixture_forward(x, which, w_target, b_target, w_mixer, b_mixer,
                            concept_dim, *, compute_dtype=jnp.bfloat16,
                            tile_b=None):
    """Convenience wrapper (prepare + apply). Cache prepare_* for hot loops."""
    params = prepare_concept_mixture_params(
        w_target, b_target, w_mixer, b_mixer, concept_dim,
        compute_dtype=compute_dtype)
    return concept_mixture_apply(params, x, which, tile_b=tile_b)


# TODO(synk): the nn.Sequential branch of the PyTorch module (split apply of
# target_network[:1] / target_network[1:]) is not implemented; only the
# nn.Linear target_network path is provided here.


# ---------------------------------------------------------------------------
# Reference & demo
# ---------------------------------------------------------------------------

def _reference(x, which, w_target, b_target, w_mixer, b_mixer, concept_dim):
    if which is None:
        return x @ w_target + b_target
    c = x[:, :concept_dim]
    r = x[:, concept_dim:]
    tgt_in = jnp.concatenate([c * (~which).astype(x.dtype), r], axis=-1)
    mix_in = c * which.astype(x.dtype)
    return (tgt_in @ w_target + b_target) + (mix_in @ w_mixer + b_mixer)


if __name__ == "__main__":
    concept_dim = 16
    residual_dim = 16
    out_dim = 32
    B = 16
    D = concept_dim + residual_dim

    key = jax.random.PRNGKey(0)
    kx, kw, kwt, kbt, kwm, kbm = jax.random.split(key, 6)

    x = jax.random.normal(kx, (B, D), jnp.float32)
    which = jax.random.bernoulli(kw, 0.5, (B, concept_dim))  # bool mask

    # target_network = Linear(D, out_dim), mixer = Linear(concept_dim, out_dim);
    # weights stored as [in, out].
    w_target = jax.random.normal(kwt, (D, out_dim), jnp.float32) * 0.1
    b_target = jax.random.normal(kbt, (out_dim,), jnp.float32) * 0.1
    w_mixer = jax.random.normal(kwm, (concept_dim, out_dim), jnp.float32) * 0.1
    b_mixer = jax.random.normal(kbm, (out_dim,), jnp.float32) * 0.1

    ref_mix = _reference(x, which, w_target, b_target, w_mixer, b_mixer,
                         concept_dim)
    ref_none = _reference(x, None, w_target, b_target, w_mixer, b_mixer,
                          concept_dim)

    # Default bf16-MXU path (validated against the f32 reference with a
    # bf16-appropriate tolerance).
    params = prepare_concept_mixture_params(w_target, b_target, w_mixer,
                                            b_mixer, concept_dim)
    out = jax.block_until_ready(concept_mixture_apply(params, x, which))
    assert out.shape == ref_mix.shape
    assert jnp.allclose(out, ref_mix, atol=3e-2, rtol=3e-2)

    out_none = jax.block_until_ready(concept_mixture_apply(params, x, None))
    assert out_none.shape == ref_none.shape
    assert jnp.allclose(out_none, ref_none, atol=3e-2, rtol=3e-2)

    # f32-compute path for a tight numerical check of the kernel structure.
    params_f32 = prepare_concept_mixture_params(
        w_target, b_target, w_mixer, b_mixer, concept_dim,
        compute_dtype=jnp.float32)
    out_f32 = jax.block_until_ready(concept_mixture_apply(params_f32, x, which))
    assert jnp.allclose(out_f32, ref_mix, atol=1e-4, rtol=1e-4)

    print("KERNEL_OK")
</pallas_src>

<mosaic_0001>
module attributes {stable_mosaic.version = 11 : i64} {
  func.func @_mixture_kernel(%arg0: i32, %arg1: memref<16x32xf32, #tpu.memory_space<vmem>>, %arg2: memref<16x32xbf16, #tpu.memory_space<vmem>>, %arg3: memref<32x32xbf16, #tpu.memory_space<vmem>>, %arg4: memref<32x32xbf16, #tpu.memory_space<vmem>>, %arg5: memref<1x32xf32, #tpu.memory_space<vmem>>, %arg6: memref<16x32xf32, #tpu.memory_space<vmem>>) attributes {dimension_semantics = [#tpu.dimension_semantics<parallel>], iteration_bounds = array<i64: 1>, scalar_prefetch = 0 : i64, scratch_operands = 0 : i64, tpu.core_type = #tpu.core_type<tc>, window_params = [{transform_indices = @transform_0, window_bounds = array<i64: 16, 32>}, {transform_indices = @transform_1, window_bounds = array<i64: 16, 32>}, {pipeline_mode = #tpu.pipeline_mode<synchronous>, transform_indices = @transform_2, window_bounds = array<i64: 32, 32>}, {pipeline_mode = #tpu.pipeline_mode<synchronous>, transform_indices = @transform_3, window_bounds = array<i64: 32, 32>}, {pipeline_mode = #tpu.pipeline_mode<synchronous>, transform_indices = @transform_4, window_bounds = array<i64: 1, 32>}, {transform_indices = @transform_5, window_bounds = array<i64: 16, 32>}]} {
    %c0 = arith.constant 0 : index
    %c0_0 = arith.constant 0 : index
    %0 = vector.load %arg1[%c0, %c0_0] : memref<16x32xf32, #tpu.memory_space<vmem>>, vector<16x32xf32>
    %c0_1 = arith.constant 0 : index
    %c0_2 = arith.constant 0 : index
    %1 = vector.load %arg2[%c0_1, %c0_2] : memref<16x32xbf16, #tpu.memory_space<vmem>>, vector<16x32xbf16>
    %2 = arith.extf %1 : vector<16x32xbf16> to vector<16x32xf32>
    %3 = arith.mulf %0, %2 : vector<16x32xf32>
    %4 = arith.truncf %0 : vector<16x32xf32> to vector<16x32xbf16>
    %c0_3 = arith.constant 0 : index
    %c0_4 = arith.constant 0 : index
    %5 = vector.load %arg3[%c0_3, %c0_4] : memref<32x32xbf16, #tpu.memory_space<vmem>>, vector<32x32xbf16>
    %cst = arith.constant dense<0.000000e+00> : vector<16x32xf32>
    %6 = tpu.matmul %4, %5, %cst {dimension_numbers = #tpu.dot_dimension_numbers<[1], [0], [0], [1], [0, 0, 1, 1], [], []>} : vector<16x32xbf16>, vector<32x32xbf16>, vector<16x32xf32> -> vector<16x32xf32>
    %7 = arith.truncf %3 : vector<16x32xf32> to vector<16x32xbf16>
    %c0_5 = arith.constant 0 : index
    %c0_6 = arith.constant 0 : index
    %8 = vector.load %arg4[%c0_5, %c0_6] : memref<32x32xbf16, #tpu.memory_space<vmem>>, vector<32x32xbf16>
    %cst_7 = arith.constant dense<0.000000e+00> : vector<16x32xf32>
    %9 = tpu.matmul %7, %8, %cst_7 {dimension_numbers = #tpu.dot_dimension_numbers<[1], [0], [0], [1], [0, 0, 1, 1], [], []>} : vector<16x32xbf16>, vector<32x32xbf16>, vector<16x32xf32> -> vector<16x32xf32>
    %10 = arith.addf %6, %9 : vector<16x32xf32>
    %c0_8 = arith.constant 0 : index
    %c0_9 = arith.constant 0 : index
    %11 = vector.load %arg5[%c0_8, %c0_9] : memref<1x32xf32, #tpu.memory_space<vmem>>, vector<1x32xf32>
    %12 = vector.broadcast %11 : vector<1x32xf32> to vector<16x32xf32>
    %13 = arith.addf %10, %12 : vector<16x32xf32>
    %c0_10 = arith.constant 0 : index
    %c0_11 = arith.constant 0 : index
    %14 = vector.load %arg6[%c0_10, %c0_11] : memref<16x32xf32, #tpu.memory_space<vmem>>, vector<16x32xf32>
    tpu.vector_store %arg6[%c0_10, %c0_11], %13 {strides = array<i32>} : memref<16x32xf32, #tpu.memory_space<vmem>>, vector<16x32xf32>,
    return
  }
  func.func @transform_0(%arg0: i32) -> (i32, i32) {
    %c0_i32 = arith.constant 0 : i32
    %c0_i32_0 = arith.constant 0 : i32
    return %arg0, %c0_i32 : i32, i32
  }
  func.func @transform_1(%arg0: i32) -> (i32, i32) {
    %c0_i32 = arith.constant 0 : i32
    %c0_i32_0 = arith.constant 0 : i32
    return %arg0, %c0_i32 : i32, i32
  }
  func.func @transform_2(%arg0: i32) -> (i32, i32) {
    %c0_i32 = arith.constant 0 : i32
    %c0_i32_0 = arith.constant 0 : i32
    %c0_i32_1 = arith.constant 0 : i32
    return %c0_i32, %c0_i32_0 : i32, i32
  }
  func.func @transform_3(%arg0: i32) -> (i32, i32) {
    %c0_i32 = arith.constant 0 : i32
    %c0_i32_0 = arith.constant 0 : i32
    %c0_i32_1 = arith.constant 0 : i32
    return %c0_i32, %c0_i32_0 : i32, i32
  }
  func.func @transform_4(%arg0: i32) -> (i32, i32) {
    %c0_i32 = arith.constant 0 : i32
    %c0_i32_0 = arith.constant 0 : i32
    %c0_i32_1 = arith.constant 0 : i32
    return %c0_i32, %c0_i32_0 : i32, i32
  }
  func.func @transform_5(%arg0: i32) -> (i32, i32) {
    %c0_i32 = arith.constant 0 : i32
    %c0_i32_0 = arith.constant 0 : i32
    return %arg0, %c0_i32 : i32, i32
  }
}

module attributes {stable_mosaic.version = 11 : i64} {
  func.func @_mixture_kernel(%arg0: i32, %arg1: memref<16x32xf32, #tpu.memory_space<vmem>>, %arg2: memref<16x32xbf16, #tpu.memory_space<vmem>>, %arg3: memref<32x32xbf16, #tpu.memory_space<vmem>>, %arg4: memref<32x32xbf16, #tpu.memory_space<vmem>>, %arg5: memref<1x32xf32, #tpu.memory_space<vmem>>, %arg6: memref<16x32xf32, #tpu.memory_space<vmem>>) attributes {dimension_semantics = [#tpu.dimension_semantics<parallel>], iteration_bounds = array<i64: 1>, scalar_prefetch = 0 : i64, scratch_operands = 0 : i64, tpu.core_type = #tpu.core_type<tc>, window_params = [{transform_indices = @transform_0, window_bounds = array<i64: 16, 32>}, {transform_indices = @transform_1, window_bounds = array<i64: 16, 32>}, {pipeline_mode = #tpu.pipeline_mode<synchronous>, transform_indices = @transform_2, window_bounds = array<i64: 32, 32>}, {pipeline_mode = #tpu.pipeline_mode<synchronous>, transform_indices = @transform_3, window_bounds = array<i64: 32, 32>}, {pipeline_mode = #tpu.pipeline_mode<synchronous>, transform_indices = @transform_4, window_bounds = array<i64: 1, 32>}, {transform_indices = @transform_5, window_bounds = array<i64: 16, 32>}]} {
    %c0 = arith.constant 0 : index
    %c0_0 = arith.constant 0 : index
    %0 = vector.load %arg1[%c0, %c0_0] : memref<16x32xf32, #tpu.memory_space<vmem>>, vector<16x32xf32>
    %c0_1 = arith.constant 0 : index
    %c0_2 = arith.constant 0 : index
    %1 = vector.load %arg2[%c0_1, %c0_2] : memref<16x32xbf16, #tpu.memory_space<vmem>>, vector<16x32xbf16>
    %2 = arith.extf %1 : vector<16x32xbf16> to vector<16x32xf32>
    %3 = arith.mulf %0, %2 : vector<16x32xf32>
    %4 = arith.truncf %0 : vector<16x32xf32> to vector<16x32xbf16>
    %c0_3 = arith.constant 0 : index
    %c0_4 = arith.constant 0 : index
    %5 = vector.load %arg3[%c0_3, %c0_4] : memref<32x32xbf16, #tpu.memory_space<vmem>>, vector<32x32xbf16>
    %cst = arith.constant dense<0.000000e+00> : vector<16x32xf32>
    %6 = tpu.matmul %4, %5, %cst {dimension_numbers = #tpu.dot_dimension_numbers<[1], [0], [0], [1], [0, 0, 1, 1], [], []>} : vector<16x32xbf16>, vector<32x32xbf16>, vector<16x32xf32> -> vector<16x32xf32>
    %7 = arith.truncf %3 : vector<16x32xf32> to vector<16x32xbf16>
    %c0_5 = arith.constant 0 : index
    %c0_6 = arith.constant 0 : index
    %8 = vector.load %arg4[%c0_5, %c0_6] : memref<32x32xbf16, #tpu.memory_space<vmem>>, vector<32x32xbf16>
    %cst_7 = arith.constant dense<0.000000e+00> : vector<16x32xf32>
    %9 = tpu.matmul %7, %8, %cst_7 {dimension_numbers = #tpu.dot_dimension_numbers<[1], [0], [0], [1], [0, 0, 1, 1], [], []>} : vector<16x32xbf16>, vector<32x32xbf16>, vector<16x32xf32> -> vector<16x32xf32>
    %10 = arith.addf %6, %9 : vector<16x32xf32>
    %c0_8 = arith.constant 0 : index
    %c0_9 = arith.constant 0 : index
    %11 = vector.load %arg5[%c0_8, %c0_9] : memref<1x32xf32, #tpu.memory_space<vmem>>, vector<1x32xf32>
    %12 = vector.broadcast %11 : vector<1x32xf32> to vector<16x32xf32>
    %13 = arith.addf %10, %12 : vector<16x32xf32>
    %c0_10 = arith.constant 0 : index
    %c0_11 = arith.constant 0 : index
    %14 = vector.load %arg6[%c0_10, %c0_11] : memref<16x32xf32, #tpu.memory_space<vmem>>, vector<16x32xf32>
    tpu.vector_store %arg6[%c0_10, %c0_11], %13 {strides = array<i32>} : memref<16x32xf32, #tpu.memory_space<vmem>>, vector<16x32xf32>,
    return
  }
  func.func @transform_0(%arg0: i32) -> (i32, i32) {
    %c0_i32 = arith.constant 0 : i32
    %c0_i32_0 = arith.constant 0 : i32
    return %arg0, %c0_i32 : i32, i32
  }
  func.func @transform_1(%arg0: i32) -> (i32, i32) {
    %c0_i32 = arith.constant 0 : i32
    %c0_i32_0 = arith.constant 0 : i32
    return %arg0, %c0_i32 : i32, i32
  }
  func.func @transform_2(%arg0: i32) -> (i32, i32) {
    %c0_i32 = arith.constant 0 : i32
    %c0_i32_0 = arith.constant 0 : i32
    %c0_i32_1 = arith.constant 0 : i32
    return %c0_i32, %c0_i32_0 : i32, i32
  }
  func.func @transform_3(%arg0: i32) -> (i32, i32) {
    %c0_i32 = arith.constant 0 : i32
    %c0_i32_0 = arith.constant 0 : i32
    %c0_i32_1 = arith.constant 0 : i32
    return %c0_i32, %c0_i32_0 : i32, i32
  }
  func.func @transform_4(%arg0: i32) -> (i32, i32) {
    %c0_i32 = arith.constant 0 : i32
    %c0_i32_0 = arith.constant 0 : i32
    %c0_i32_1 = arith.constant 0 : i32
    return %c0_i32, %c0_i32_0 : i32, i32
  }
  func.func @transform_5(%arg0: i32) -> (i32, i32) {
    %c0_i32 = arith.constant 0 : i32
    %c0_i32_0 = arith.constant 0 : i32
    return %arg0, %c0_i32 : i32, i32
  }
}

</mosaic_0001>

<llo_original>
// kernel: tpu_custom_call.1
$region0: #{tpu_custom_call.1}
  #allocation0 [shape = 'u32[]', space=smem, size = 0x4, offset = 0x4, fixed_abs, tag = 'smem constant byte address 0x4 - core index']
  #allocation1 [shape = 'u32[144,128]{1,0:T(1,128)}', space=vmem, size = 0x12000, scoped, tag = 'internal scratch']
  %s0 = inlined_call_operand.hbm [shape: f32[16,32], index: 0, kind: input, shape index: {}]
  %s1 = inlined_call_operand.hbm [shape: bf16[16,32], index: 1, kind: input, shape index: {}]
  %s2 = inlined_call_operand.hbm [shape: bf16[32,32], index: 2, kind: input, shape index: {}]
  %s3 = inlined_call_operand.hbm [shape: bf16[32,32], index: 3, kind: input, shape index: {}]
  %s4 = inlined_call_operand.vmem [shape: f32[1,32], index: 4, kind: input, shape index: {}]
  %s5 = inlined_call_operand.hbm [shape: f32[16,32], index: 5, kind: output, shape index: {}]
  %s6 = sld [smem:[#allocation0]]
  $region46: #{tpu_custom_call.1} parent=0
    _
  %s8 = ssub.s32 1, %s6
  %s9 = scalar_select 0, %s8, %s6
  $region1: #{tpu_custom_call.1} parent=0
    #allocation2 [shape = 'u8[8192]{0}', space=vmem, size = 0x2000, scoped, tag = 'input window, operand 0, single buffered']
    #allocation3 [shape = 's32[1]{0}', space=sflag, size = 0x4, scoped, tag = 'scoped memory for tpu_custom_call.1']
    #allocation4 [shape = 's32[1]{0}', space=sflag, size = 0x4, scoped, tag = 'scoped memory for tpu_custom_call.1']
    #allocation5 [shape = 'u8[4096]{0}', space=vmem, size = 0x1000, scoped, tag = 'input window, operand 1, single buffered']
    #allocation6 [shape = 's32[1]{0}', space=sflag, size = 0x4, scoped, tag = 'scoped memory for tpu_custom_call.1']
    #allocation7 [shape = 'u8[8192]{0}', space=vmem, size = 0x2000, scoped, tag = 'input window, operand 2, single buffered']
    #allocation8 [shape = 'u8[8192]{0}', space=vmem, size = 0x2000, scoped, tag = 'input window, operand 3, single buffered']
    #allocation9 [shape = 's32[1]{0}', space=sflag, size = 0x4, scoped, tag = 'scoped memory for tpu_custom_call.1']
    #allocation10 [shape = 'u8[8192]{0}', space=vmem, size = 0x2000, scoped, tag = 'output window, operand 0, single buffered']
    %10 = vsyncpa [#allocation3], 0
    %11 = vsyncpa [#allocation6], 0
    %12 = vsyncpa [#allocation9], 0
    %13 = vsyncpa [#allocation4], 0
    // Predicated region
    $region2: #{tpu_custom_call.1} parent=1 // pred_check
      _
    $region3: #{tpu_custom_call.1} parent=1 // pred_check_branch
      %15 = sbr.rel (0) target = $region5
    $region4: #{tpu_custom_call.1} parent=1 // pred_region
      %s17 = ssub.s32 256, 256
      %18 = vsyncadd [#allocation3], %s17
      %s19 = sshll.u32 [#allocation2], 4
      %s20 = int_to_ptr.vmem [resolvable:$true] %s19
      %25 = dma.hbm_to_vmem [thread:$0]  %s0, 256, %s20, [#allocation3], 128, 128, 8
    $region5: #{tpu_custom_call.1} parent=1 // pred_fallthru
      _
    // Predicated region
    $region6: #{tpu_custom_call.1} parent=1 // pred_check
      _
    $region7: #{tpu_custom_call.1} parent=1 // pred_check_branch
      %27 = sbr.rel (0) target = $region9
    $region8: #{tpu_custom_call.1} parent=1 // pred_region
      %s29 = ssub.s32 128, 128
      %30 = vsyncadd [#allocation6], %s29
      %s31 = sshll.u32 [#allocation5], 4
      %s32 = int_to_ptr.vmem [resolvable:$true] %s31
      %37 = dma.hbm_to_vmem [thread:$0]  %s1, 128, %s32, [#allocation6], 64, 64, 4
    $region9: #{tpu_custom_call.1} parent=1 // pred_fallthru
      _
    // Predicated region
    $region10: #{tpu_custom_call.1} parent=1 // pred_check
      _
    $region11: #{tpu_custom_call.1} parent=1 // pred_check_branch
      %39 = sbr.rel (0) target = $region13
    $region12: #{tpu_custom_call.1} parent=1 // pred_region
      %s41 = ssub.s32 256, 256
      %42 = vsyncadd [#allocation6], %s41
      %s43 = sshll.u32 [#allocation7], 4
      %s44 = int_to_ptr.vmem [resolvable:$true] %s43
      %49 = dma.hbm_to_vmem [thread:$0]  %s2, 256, %s44, [#allocation6], 64, 64, 4
    $region13: #{tpu_custom_call.1} parent=1 // pred_fallthru
      _
    // Predicated region
    $region14: #{tpu_custom_call.1} parent=1 // pred_check
      _
    $region15: #{tpu_custom_call.1} parent=1 // pred_check_branch
      %51 = sbr.rel (0) target = $region17
    $region16: #{tpu_custom_call.1} parent=1 // pred_region
      %s53 = ssub.s32 256, 256
      %54 = vsyncadd [#allocation9], %s53
      %s55 = sshll.u32 [#allocation8], 4
      %s56 = int_to_ptr.vmem [resolvable:$true] %s55
      %61 = dma.hbm_to_vmem [thread:$0]  %s3, 256, %s56, [#allocation9], 64, 64, 4
    $region17: #{tpu_custom_call.1} parent=1 // pred_fallthru
      _
    // Predicated region
    $region18: #{tpu_custom_call.1} parent=1 // pred_check
      _
    $region19: #{tpu_custom_call.1} parent=1 // pred_check_branch
      %63 = sbr.rel (0) target = $region21
    $region20: #{tpu_custom_call.1} parent=1 // pred_region
      _
    $region21: #{tpu_custom_call.1} parent=1 // pred_fallthru
      _
    // Predicated region
    $region22: #{tpu_custom_call.1} parent=1 // pred_check
      _
    $region23: #{tpu_custom_call.1} parent=1 // pred_check_branch
      %65 = sbr.rel (0) target = $region25
    $region24: #{tpu_custom_call.1} parent=1 // pred_region
      %66 = dma.done [#allocation3], 256
    $region25: #{tpu_custom_call.1} parent=1 // pred_fallthru
      _
    // Predicated region
    $region26: #{tpu_custom_call.1} parent=1 // pred_check
      _
    $region27: #{tpu_custom_call.1} parent=1 // pred_check_branch
      %68 = sbr.rel (0) target = $region29
    $region28: #{tpu_custom_call.1} parent=1 // pred_region
      %69 = dma.done [#allocation6], 128
    $region29: #{tpu_custom_call.1} parent=1 // pred_fallthru
      _
    // Predicated region
    $region30: #{tpu_custom_call.1} parent=1 // pred_check
      _
    $region31: #{tpu_custom_call.1} parent=1 // pred_check_branch
      %71 = sbr.rel (0) target = $region33
    $region32: #{tpu_custom_call.1} parent=1 // pred_region
      %72 = dma.done [#allocation6], 256
    $region33: #{tpu_custom_call.1} parent=1 // pred_fallthru
      _
    // Predicated region
    $region34: #{tpu_custom_call.1} parent=1 // pred_check
      _
    $region35: #{tpu_custom_call.1} parent=1 // pred_check_branch
      %74 = sbr.rel (0) target = $region37
    $region36: #{tpu_custom_call.1} parent=1 // pred_region
      %75 = dma.done [#allocation9], 256
    $region37: #{tpu_custom_call.1} parent=1 // pred_fallthru
      _
    %v77 = vld [vmem:[#allocation2] sm:$0xff]
    %v78 = vld [vmem:[#allocation2 + $0x8] sm:$0xff]
    %v79 = vld [vmem:[#allocation5] sm:$0xf]
    %v80 = vld [vmem:[#allocation5 + $0x4] sm:$0xf]
    %v81 = vunpack.c.l.bf16 %v79
    %v82 = vunpack.c.l.bf16 %v80
    %v83 = vmul.f32 %v77, %v81
    %v84 = vmul.f32 %v78, %v82
    %v85 = vpack.c.bf16 %v78, %v77
    %v86 = vld [vmem:[#allocation7] sm:$0xf]
    %v87 = vld [vmem:[#allocation7 + $0x4] sm:$0xf]
    %v88 = vld [vmem:[#allocation7 + $0x8] sm:$0xf]
    %v89 = vld [vmem:[#allocation7 + $0xc] sm:$0xf]
    %v90 = vpack.c.bf16 %v84, %v83
    %v91 = vld [vmem:[#allocation8] sm:$0xf]
    %v92 = vld [vmem:[#allocation8 + $0x4] sm:$0xf]
    %v93 = vld [vmem:[#allocation8 + $0x8] sm:$0xf]
    %v94 = vld [vmem:[#allocation8 + $0xc] sm:$0xf]
    %v99 = vunpack.c.l.b16 %v91
    %v100 = vunpack.c.l.b16 %v92
    %v101 = vunpack.c.l.b16 %v93
    %v102 = vunpack.c.l.b16 %v94
    %v103 = vpack.c.b16 %v100, %v99
    %v104 = vpack.c.b16 %v102, %v101
    %vm107 = vcmask 261120
    %v109 = vsel %vm107, %v90, 0
    %111 = vmatprep.subr.bf16.mxu0 0
    %112 = vmatpush1.bf16.msra.mxu0 %v103
    %113 = vmatprep.subr.bf16.mxu0 0
    %114 = vmatpush1.bf16.msra.mxu0 %v104
    %115 = vmatprep.subr.bf16.mxu0 0
    %116 = vmatpush1.bf16.msra.mxu0 0
    %117 = vmatprep.subr.bf16.mxu0 0
    %118 = vmatpush1.bf16.msra.mxu0 0
    %119 = vmatprep.subr.bf16.mxu0 0
    %120 = vmatpush1.bf16.msra.mxu0 0
    %121 = vmatprep.subr.bf16.mxu0 0
    %122 = vmatpush1.bf16.msra.mxu0 0
    %123 = vmatprep.subr.bf16.mxu0 0
    %124 = vmatpush1.bf16.msra.mxu0 0
    %125 = vmatprep.subr.bf16.mxu0 0
    %126 = vmatpush1.bf16.msra.mxu0 0
    %127 = vmatprep.subr.bf16.mxu0 0
    %128 = vmatpush1.bf16.msra.mxu0 0
    %129 = vmatprep.subr.bf16.mxu0 0
    %130 = vmatpush1.bf16.msra.mxu0 0
    %131 = vmatprep.subr.bf16.mxu0 0
    %132 = vmatpush1.bf16.msra.mxu0 0
    %133 = vmatprep.subr.bf16.mxu0 0
    %134 = vmatpush1.bf16.msra.mxu0 0
    %135 = vmatprep.subr.bf16.mxu0 0
    %136 = vmatpush1.bf16.msra.mxu0 0
    %137 = vmatprep.subr.bf16.mxu0 0
    %138 = vmatpush1.bf16.msra.mxu0 0
    %139 = vmatprep.subr.bf16.mxu0 0
    %140 = vmatpush1.bf16.msra.mxu0 0
    %141 = vmatprep.subr.bf16.mxu0 0
    %142 = vmatpush1.bf16.msra.mxu0 0
    %143 = vmatprep.mubr.bf16.mxu0 0
    %144 = vmatmul.mubr.bf16.gmra.mrb[0].mxu0 %v109
    %v145 = vpop.f32.mrb[0].mxu0
    %v146 = vadd.f32 0.0, %v145
    %v147 = vpop.f32.mrb[0].mxu0
    %v148 = vpop.f32.mrb[0].mxu0
    %v149 = vadd.f32 0.0, %v148
    %v150 = vpop.f32.mrb[0].mxu0
    %151 = vdwg.mxu0
    %v156 = vunpack.c.l.b16 %v86
    %v157 = vunpack.c.l.b16 %v87
    %v158 = vunpack.c.l.b16 %v88
    %v159 = vunpack.c.l.b16 %v89
    %v160 = vpack.c.b16 %v157, %v156
    %v161 = vpack.c.b16 %v159, %v158
    %v165 = vsel %vm107, %v85, 0
    %167 = vmatprep.subr.bf16.mxu0 0
    %168 = vmatpush1.bf16.msra.mxu0 %v160
    %169 = vmatprep.subr.bf16.mxu0 0
    %170 = vmatpush1.bf16.msra.mxu0 %v161
    %171 = vmatprep.subr.bf16.mxu0 0
    %172 = vmatpush1.bf16.msra.mxu0 0
    %173 = vmatprep.subr.bf16.mxu0 0
    %174 = vmatpush1.bf16.msra.mxu0 0
    %175 = vmatprep.subr.bf16.mxu0 0
    %176 = vmatpush1.bf16.msra.mxu0 0
    %177 = vmatprep.subr.bf16.mxu0 0
    %178 = vmatpush1.bf16.msra.mxu0 0
    %179 = vmatprep.subr.bf16.mxu0 0
    %180 = vmatpush1.bf16.msra.mxu0 0
    %181 = vmatprep.subr.bf16.mxu0 0
    %182 = vmatpush1.bf16.msra.mxu0 0
    %183 = vmatprep.subr.bf16.mxu0 0
    %184 = vmatpush1.bf16.msra.mxu0 0
    %185 = vmatprep.subr.bf16.mxu0 0
    %186 = vmatpush1.bf16.msra.mxu0 0
    %187 = vmatprep.subr.bf16.mxu0 0
    %188 = vmatpush1.bf16.msra.mxu0 0
    %189 = vmatprep.subr.bf16.mxu0 0
    %190 = vmatpush1.bf16.msra.mxu0 0
    %191 = vmatprep.subr.bf16.mxu0 0
    %192 = vmatpush1.bf16.msra.mxu0 0
    %193 = vmatprep.subr.bf16.mxu0 0
    %194 = vmatpush1.bf16.msra.mxu0 0
    %195 = vmatprep.subr.bf16.mxu0 0
    %196 = vmatpush1.bf16.msra.mxu0 0
    %197 = vmatprep.subr.bf16.mxu0 0
    %198 = vmatpush1.bf16.msra.mxu0 0
    %199 = vmatprep.mubr.bf16.mxu0 0
    %200 = vmatmul.mubr.bf16.gmra.mrb[0].mxu0 %v165
    %v201 = vpop.f32.mrb[0].mxu0
    %v202 = vadd.f32 %v146, %v201
    %v203 = vpop.f32.mrb[0].mxu0
    %v204 = vpop.f32.mrb[0].mxu0
    %v205 = vadd.f32 %v149, %v204
    %v206 = vpop.f32.mrb[0].mxu0
    %207 = vdwg.mxu0
    %v208 = vld [vmem:[%s4] sm:$0x1]
    %v210 = vlaneseq
    %v211 = vshrl.u32 %v210, 7
    %v212 = vsub.s32 0, %v211
    %v213 = vrot.slane %v208, %v212
    %v215 = vadd.f32 %v202, %v213
    %v216 = vadd.f32 %v205, %v213
    %217 = vst.msk [vmem:[#allocation10] sm:$0xff] %vm107, %v215
    %218 = vst.msk [vmem:[#allocation10 + $0x8] sm:$0xff] %vm107, %v216
    // Predicated region
    $region38: #{tpu_custom_call.1} parent=1 // pred_check
      _
    $region39: #{tpu_custom_call.1} parent=1 // pred_check_branch
      %220 = sbr.rel (0) target = $region41
    $region40: #{tpu_custom_call.1} parent=1 // pred_region
      %s222 = ssub.s32 256, 256
      %223 = vsyncadd [#allocation4], %s222
      %s224 = sshll.u32 [#allocation10], 4
      %s225 = int_to_ptr.vmem [resolvable:$true] %s224
      %230 = dma.vmem_to_hbm [thread:$0]  %s225, 256, %s5, [#allocation4], 128, 128, 8
    $region41: #{tpu_custom_call.1} parent=1 // pred_fallthru
      _
    // Predicated region
    $region42: #{tpu_custom_call.1} parent=1 // pred_check
      _
    $region43: #{tpu_custom_call.1} parent=1 // pred_check_branch
      %232 = sbr.rel (0) target = $region45
    $region44: #{tpu_custom_call.1} parent=1 // pred_region
      %233 = dma.done [#allocation4], 256
    $region45: #{tpu_custom_call.1} parent=1 // pred_fallthru
      _
    %234 = vsyncpa [#allocation3], 1
    %235 = vsyncpa [#allocation6], 1
    %236 = vsyncpa [#allocation9], 1
    %237 = vsyncpa [#allocation4], 1

// kernel: tpu_custom_call.1
$region0: #{tpu_custom_call.1}
  #allocation0 [shape = 'u32[]', space=smem, size = 0x4, offset = 0x4, fixed_abs, tag = 'smem constant byte address 0x4 - core index']
  #allocation1 [shape = 'u32[144,128]{1,0:T(1,128)}', space=vmem, size = 0x12000, scoped, tag = 'internal scratch']
  %s0 = inlined_call_operand.hbm [shape: f32[16,32], index: 0, kind: input, shape index: {}]
  %s1 = inlined_call_operand.hbm [shape: bf16[16,32], index: 1, kind: input, shape index: {}]
  %s2 = inlined_call_operand.hbm [shape: bf16[32,32], index: 2, kind: input, shape index: {}]
  %s3 = inlined_call_operand.hbm [shape: bf16[32,32], index: 3, kind: input, shape index: {}]
  %s4 = inlined_call_operand.vmem [shape: f32[1,32], index: 4, kind: input, shape index: {}]
  %s5 = inlined_call_operand.hbm [shape: f32[16,32], index: 5, kind: output, shape index: {}]
  %s6 = sld [smem:[#allocation0]]
  $region46: #{tpu_custom_call.1} parent=0
    _
  %s8 = ssub.s32 1, %s6
  %s9 = scalar_select 0, %s8, %s6
  $region1: #{tpu_custom_call.1} parent=0
    #allocation2 [shape = 'u8[8192]{0}', space=vmem, size = 0x2000, scoped, tag = 'input window, operand 0, single buffered']
    #allocation3 [shape = 's32[1]{0}', space=sflag, size = 0x4, scoped, tag = 'scoped memory for tpu_custom_call.1']
    #allocation4 [shape = 's32[1]{0}', space=sflag, size = 0x4, scoped, tag = 'scoped memory for tpu_custom_call.1']
    #allocation5 [shape = 'u8[4096]{0}', space=vmem, size = 0x1000, scoped, tag = 'input window, operand 1, single buffered']
    #allocation6 [shape = 's32[1]{0}', space=sflag, size = 0x4, scoped, tag = 'scoped memory for tpu_custom_call.1']
    #allocation7 [shape = 'u8[8192]{0}', space=vmem, size = 0x2000, scoped, tag = 'input window, operand 2, single buffered']
    #allocation8 [shape = 'u8[8192]{0}', space=vmem, size = 0x2000, scoped, tag = 'input window, operand 3, single buffered']
    #allocation9 [shape = 's32[1]{0}', space=sflag, size = 0x4, scoped, tag = 'scoped memory for tpu_custom_call.1']
    #allocation10 [shape = 'u8[8192]{0}', space=vmem, size = 0x2000, scoped, tag = 'output window, operand 0, single buffered']
    %10 = vsyncpa [#allocation3], 0
    %11 = vsyncpa [#allocation6], 0
    %12 = vsyncpa [#allocation9], 0
    %13 = vsyncpa [#allocation4], 0
    // Predicated region
    $region2: #{tpu_custom_call.1} parent=1 // pred_check
      _
    $region3: #{tpu_custom_call.1} parent=1 // pred_check_branch
      %15 = sbr.rel (0) target = $region5
    $region4: #{tpu_custom_call.1} parent=1 // pred_region
      %s17 = ssub.s32 256, 256
      %18 = vsyncadd [#allocation3], %s17
      %s19 = sshll.u32 [#allocation2], 4
      %s20 = int_to_ptr.vmem [resolvable:$true] %s19
      %25 = dma.hbm_to_vmem [thread:$0]  %s0, 256, %s20, [#allocation3], 128, 128, 8
    $region5: #{tpu_custom_call.1} parent=1 // pred_fallthru
      _
    // Predicated region
    $region6: #{tpu_custom_call.1} parent=1 // pred_check
      _
    $region7: #{tpu_custom_call.1} parent=1 // pred_check_branch
      %27 = sbr.rel (0) target = $region9
    $region8: #{tpu_custom_call.1} parent=1 // pred_region
      %s29 = ssub.s32 128, 128
      %30 = vsyncadd [#allocation6], %s29
      %s31 = sshll.u32 [#allocation5], 4
      %s32 = int_to_ptr.vmem [resolvable:$true] %s31
      %37 = dma.hbm_to_vmem [thread:$0]  %s1, 128, %s32, [#allocation6], 64, 64, 4
    $region9: #{tpu_custom_call.1} parent=1 // pred_fallthru
      _
    // Predicated region
    $region10: #{tpu_custom_call.1} parent=1 // pred_check
      _
    $region11: #{tpu_custom_call.1} parent=1 // pred_check_branch
      %39 = sbr.rel (0) target = $region13
    $region12: #{tpu_custom_call.1} parent=1 // pred_region
      %s41 = ssub.s32 256, 256
      %42 = vsyncadd [#allocation6], %s41
      %s43 = sshll.u32 [#allocation7], 4
      %s44 = int_to_ptr.vmem [resolvable:$true] %s43
      %49 = dma.hbm_to_vmem [thread:$0]  %s2, 256, %s44, [#allocation6], 64, 64, 4
    $region13: #{tpu_custom_call.1} parent=1 // pred_fallthru
      _
    // Predicated region
    $region14: #{tpu_custom_call.1} parent=1 // pred_check
      _
    $region15: #{tpu_custom_call.1} parent=1 // pred_check_branch
      %51 = sbr.rel (0) target = $region17
    $region16: #{tpu_custom_call.1} parent=1 // pred_region
      %s53 = ssub.s32 256, 256
      %54 = vsyncadd [#allocation9], %s53
      %s55 = sshll.u32 [#allocation8], 4
      %s56 = int_to_ptr.vmem [resolvable:$true] %s55
      %61 = dma.hbm_to_vmem [thread:$0]  %s3, 256, %s56, [#allocation9], 64, 64, 4
    $region17: #{tpu_custom_call.1} parent=1 // pred_fallthru
      _
    // Predicated region
    $region18: #{tpu_custom_call.1} parent=1 // pred_check
      _
    $region19: #{tpu_custom_call.1} parent=1 // pred_check_branch
      %63 = sbr.rel (0) target = $region21
    $region20: #{tpu_custom_call.1} parent=1 // pred_region
      _
    $region21: #{tpu_custom_call.1} parent=1 // pred_fallthru
      _
    // Predicated region
    $region22: #{tpu_custom_call.1} parent=1 // pred_check
      _
    $region23: #{tpu_custom_call.1} parent=1 // pred_check_branch
      %65 = sbr.rel (0) target = $region25
    $region24: #{tpu_custom_call.1} parent=1 // pred_region
      %66 = dma.done [#allocation3], 256
    $region25: #{tpu_custom_call.1} parent=1 // pred_fallthru
      _
    // Predicated region
    $region26: #{tpu_custom_call.1} parent=1 // pred_check
      _
    $region27: #{tpu_custom_call.1} parent=1 // pred_check_branch
      %68 = sbr.rel (0) target = $region29
    $region28: #{tpu_custom_call.1} parent=1 // pred_region
      %69 = dma.done [#allocation6], 128
    $region29: #{tpu_custom_call.1} parent=1 // pred_fallthru
      _
    // Predicated region
    $region30: #{tpu_custom_call.1} parent=1 // pred_check
      _
    $region31: #{tpu_custom_call.1} parent=1 // pred_check_branch
      %71 = sbr.rel (0) target = $region33
    $region32: #{tpu_custom_call.1} parent=1 // pred_region
      %72 = dma.done [#allocation6], 256
    $region33: #{tpu_custom_call.1} parent=1 // pred_fallthru
      _
    // Predicated region
    $region34: #{tpu_custom_call.1} parent=1 // pred_check
      _
    $region35: #{tpu_custom_call.1} parent=1 // pred_check_branch
      %74 = sbr.rel (0) target = $region37
    $region36: #{tpu_custom_call.1} parent=1 // pred_region
      %75 = dma.done [#allocation9], 256
    $region37: #{tpu_custom_call.1} parent=1 // pred_fallthru
      _
    %v77 = vld [vmem:[#allocation2] sm:$0xff]
    %v78 = vld [vmem:[#allocation2 + $0x8] sm:$0xff]
    %v79 = vld [vmem:[#allocation5] sm:$0xf]
    %v80 = vld [vmem:[#allocation5 + $0x4] sm:$0xf]
    %v81 = vunpack.c.l.bf16 %v79
    %v82 = vunpack.c.l.bf16 %v80
    %v83 = vmul.f32 %v77, %v81
    %v84 = vmul.f32 %v78, %v82
    %v85 = vpack.c.bf16 %v78, %v77
    %v86 = vld [vmem:[#allocation7] sm:$0xf]
    %v87 = vld [vmem:[#allocation7 + $0x4] sm:$0xf]
    %v88 = vld [vmem:[#allocation7 + $0x8] sm:$0xf]
    %v89 = vld [vmem:[#allocation7 + $0xc] sm:$0xf]
    %v90 = vpack.c.bf16 %v84, %v83
    %v91 = vld [vmem:[#allocation8] sm:$0xf]
    %v92 = vld [vmem:[#allocation8 + $0x4] sm:$0xf]
    %v93 = vld [vmem:[#allocation8 + $0x8] sm:$0xf]
    %v94 = vld [vmem:[#allocation8 + $0xc] sm:$0xf]
    %v99 = vunpack.c.l.b16 %v91
    %v100 = vunpack.c.l.b16 %v92
    %v101 = vunpack.c.l.b16 %v93
    %v102 = vunpack.c.l.b16 %v94
    %v103 = vpack.c.b16 %v100, %v99
    %v104 = vpack.c.b16 %v102, %v101
    %vm107 = vcmask 261120
    %v109 = vsel %vm107, %v90, 0
    %111 = vmatprep.subr.bf16.mxu0 0
    %112 = vmatpush1.bf16.msra.mxu0 %v103
    %113 = vmatprep.subr.bf16.mxu0 0
    %114 = vmatpush1.bf16.msra.mxu0 %v104
    %115 = vmatprep.subr.bf16.mxu0 0
    %116 = vmatpush1.bf16.msra.mxu0 0
    %117 = vmatprep.subr.bf16.mxu0 0
    %118 = vmatpush1.bf16.msra.mxu0 0
    %119 = vmatprep.subr.bf16.mxu0 0
    %120 = vmatpush1.bf16.msra.mxu0 0
    %121 = vmatprep.subr.bf16.mxu0 0
    %122 = vmatpush1.bf16.msra.mxu0 0
    %123 = vmatprep.subr.bf16.mxu0 0
    %124 = vmatpush1.bf16.msra.mxu0 0
    %125 = vmatprep.subr.bf16.mxu0 0
    %126 = vmatpush1.bf16.msra.mxu0 0
    %127 = vmatprep.subr.bf16.mxu0 0
    %128 = vmatpush1.bf16.msra.mxu0 0
    %129 = vmatprep.subr.bf16.mxu0 0
    %130 = vmatpush1.bf16.msra.mxu0 0
    %131 = vmatprep.subr.bf16.mxu0 0
    %132 = vmatpush1.bf16.msra.mxu0 0
    %133 = vmatprep.subr.bf16.mxu0 0
    %134 = vmatpush1.bf16.msra.mxu0 0
    %135 = vmatprep.subr.bf16.mxu0 0
    %136 = vmatpush1.bf16.msra.mxu0 0
    %137 = vmatprep.subr.bf16.mxu0 0
    %138 = vmatpush1.bf16.msra.mxu0 0
    %139 = vmatprep.subr.bf16.mxu0 0
    %140 = vmatpush1.bf16.msra.mxu0 0
    %141 = vmatprep.subr.bf16.mxu0 0
    %142 = vmatpush1.bf16.msra.mxu0 0
    %143 = vmatprep.mubr.bf16.mxu0 0
    %144 = vmatmul.mubr.bf16.gmra.mrb[0].mxu0 %v109
    %v145 = vpop.f32.mrb[0].mxu0
    %v146 = vadd.f32 0.0, %v145
    %v147 = vpop.f32.mrb[0].mxu0
    %v148 = vpop.f32.mrb[0].mxu0
    %v149 = vadd.f32 0.0, %v148
    %v150 = vpop.f32.mrb[0].mxu0
    %151 = vdwg.mxu0
    %v156 = vunpack.c.l.b16 %v86
    %v157 = vunpack.c.l.b16 %v87
    %v158 = vunpack.c.l.b16 %v88
    %v159 = vunpack.c.l.b16 %v89
    %v160 = vpack.c.b16 %v157, %v156
    %v161 = vpack.c.b16 %v159, %v158
    %v165 = vsel %vm107, %v85, 0
    %167 = vmatprep.subr.bf16.mxu0 0
    %168 = vmatpush1.bf16.msra.mxu0 %v160
    %169 = vmatprep.subr.bf16.mxu0 0
    %170 = vmatpush1.bf16.msra.mxu0 %v161
    %171 = vmatprep.subr.bf16.mxu0 0
    %172 = vmatpush1.bf16.msra.mxu0 0
    %173 = vmatprep.subr.bf16.mxu0 0
    %174 = vmatpush1.bf16.msra.mxu0 0
    %175 = vmatprep.subr.bf16.mxu0 0
    %176 = vmatpush1.bf16.msra.mxu0 0
    %177 = vmatprep.subr.bf16.mxu0 0
    %178 = vmatpush1.bf16.msra.mxu0 0
    %179 = vmatprep.subr.bf16.mxu0 0
    %180 = vmatpush1.bf16.msra.mxu0 0
    %181 = vmatprep.subr.bf16.mxu0 0
    %182 = vmatpush1.bf16.msra.mxu0 0
    %183 = vmatprep.subr.bf16.mxu0 0
    %184 = vmatpush1.bf16.msra.mxu0 0
    %185 = vmatprep.subr.bf16.mxu0 0
    %186 = vmatpush1.bf16.msra.mxu0 0
    %187 = vmatprep.subr.bf16.mxu0 0
    %188 = vmatpush1.bf16.msra.mxu0 0
    %189 = vmatprep.subr.bf16.mxu0 0
    %190 = vmatpush1.bf16.msra.mxu0 0
    %191 = vmatprep.subr.bf16.mxu0 0
    %192 = vmatpush1.bf16.msra.mxu0 0
    %193 = vmatprep.subr.bf16.mxu0 0
    %194 = vmatpush1.bf16.msra.mxu0 0
    %195 = vmatprep.subr.bf16.mxu0 0
    %196 = vmatpush1.bf16.msra.mxu0 0
    %197 = vmatprep.subr.bf16.mxu0 0
    %198 = vmatpush1.bf16.msra.mxu0 0
    %199 = vmatprep.mubr.bf16.mxu0 0
    %200 = vmatmul.mubr.bf16.gmra.mrb[0].mxu0 %v165
    %v201 = vpop.f32.mrb[0].mxu0
    %v202 = vadd.f32 %v146, %v201
    %v203 = vpop.f32.mrb[0].mxu0
    %v204 = vpop.f32.mrb[0].mxu0
    %v205 = vadd.f32 %v149, %v204
    %v206 = vpop.f32.mrb[0].mxu0
    %207 = vdwg.mxu0
    %v208 = vld [vmem:[%s4] sm:$0x1]
    %v210 = vlaneseq
    %v211 = vshrl.u32 %v210, 7
    %v212 = vsub.s32 0, %v211
    %v213 = vrot.slane %v208, %v212
    %v215 = vadd.f32 %v202, %v213
    %v216 = vadd.f32 %v205, %v213
    %217 = vst.msk [vmem:[#allocation10] sm:$0xff] %vm107, %v215
    %218 = vst.msk [vmem:[#allocation10 + $0x8] sm:$0xff] %vm107, %v216
    // Predicated region
    $region38: #{tpu_custom_call.1} parent=1 // pred_check
      _
    $region39: #{tpu_custom_call.1} parent=1 // pred_check_branch
      %220 = sbr.rel (0) target = $region41
    $region40: #{tpu_custom_call.1} parent=1 // pred_region
      %s222 = ssub.s32 256, 256
      %223 = vsyncadd [#allocation4], %s222
      %s224 = sshll.u32 [#allocation10], 4
      %s225 = int_to_ptr.vmem [resolvable:$true] %s224
      %230 = dma.vmem_to_hbm [thread:$0]  %s225, 256, %s5, [#allocation4], 128, 128, 8
    $region41: #{tpu_custom_call.1} parent=1 // pred_fallthru
      _
    // Predicated region
    $region42: #{tpu_custom_call.1} parent=1 // pred_check
      _
    $region43: #{tpu_custom_call.1} parent=1 // pred_check_branch
      %232 = sbr.rel (0) target = $region45
    $region44: #{tpu_custom_call.1} parent=1 // pred_region
      %233 = dma.done [#allocation4], 256
    $region45: #{tpu_custom_call.1} parent=1 // pred_fallthru
      _
    %234 = vsyncpa [#allocation3], 1
    %235 = vsyncpa [#allocation6], 1
    %236 = vsyncpa [#allocation9], 1
    %237 = vsyncpa [#allocation4], 1

</llo_original>
